<compile_context>
chip_gen: v6e
topology: v6e:2x2x1
jax: 0.10.0
libtpu: 0.0.40
codegen_flags: <defaults>
</compile_context>

<pallas_src>
import jax
import jax.numpy as jnp
from jax.experimental import pallas as pl
from jax.experimental.pallas import tpu as pltpu


LEAKY_SLOPE = 0.01  # nn.LeakyReLU default negative_slope


def _leaky_relu(x):
    # maximum(x, a*x) == LeakyReLU(x) for 0 < a < 1; lowers to vmul+vmax.
    return jnp.maximum(x, LEAKY_SLOPE * x)


def _round_up(n, m):
    return ((n + m - 1) // m) * m


def actor_kernel(x_ref, w1_ref, b1_ref, w2_ref, b2_ref, w3_ref, b3_ref, o_ref):
    # x tile: [tb, num_states] f32; w*: bf16 [in, out]; b1/b2: bf16 [1, out];
    # b3: f32 [1, num_actions].
    x = x_ref[...].astype(jnp.bfloat16)

    # fc1: bf16 MXU matmul, f32 accumulate; bias + LeakyReLU epilogue in bf16.
    h1 = jnp.dot(x, w1_ref[...], preferred_element_type=jnp.float32)
    h1 = _leaky_relu(h1.astype(jnp.bfloat16) + b1_ref[...])

    # fc2: same bf16 epilogue; h stays bf16 for the next matmul (no extra cast).
    h2 = jnp.dot(h1, w2_ref[...], preferred_element_type=jnp.float32)
    h2 = _leaky_relu(h2.astype(jnp.bfloat16) + b2_ref[...])

    # fc3 head: bias + tanh in f32 (tiny N, keep output accuracy).
    h3 = jnp.dot(h2, w3_ref[...], preferred_element_type=jnp.float32) + b3_ref[...]
    o_ref[...] = jnp.tanh(h3).astype(o_ref.dtype)


def actor_forward(x, params, *, tile_b=1024):
    """x: [B, num_states] float32.
    params: w1/w2/w3 bf16 [in, out]; b1/b2 bf16 [1, out]; b3 f32 [1, num_actions]."""
    w1, b1, w2, b2, w3, b3 = (params[k] for k in ("w1", "b1", "w2", "b2", "w3", "b3"))
    B, num_states = x.shape
    num_actions = w3.shape[1]

    # Batch tile:
    #   * cap at tile_b and at 8192 rows (v7x VMEM headroom; h1/h2 ~4 MiB/1K rows),
    #   * cap at round_up(cdiv(B,2), 8) so the grid has >= 2 steps for moderate B
    #     (lets "parallel" shard the batch across v7x's two TensorCores),
    #   * round up to a multiple of 8 sublanes.
    half_b = _round_up(pl.cdiv(B, 2), 8)
    tb = max(8, min(tile_b, 8192, half_b))
    tb = _round_up(tb, 8)

    grid = (pl.cdiv(B, tb),)  # ragged last block handled by Pallas masking

    # Weights/biases: constant block index -> VMEM-resident across all batch
    # tiles (Pallas skips the refetch when the block index repeats).
    const2d = lambda arr: pl.BlockSpec(arr.shape, lambda i: (0, 0))

    out = pl.pallas_call(
        actor_kernel,
        out_shape=jax.ShapeDtypeStruct((B, num_actions), jnp.float32),
        grid=grid,
        in_specs=[
            pl.BlockSpec((tb, num_states), lambda i: (i, 0)),
            const2d(w1), const2d(b1),
            const2d(w2), const2d(b2),
            const2d(w3), const2d(b3),
        ],
        out_specs=pl.BlockSpec((tb, num_actions), lambda i: (i, 0)),
        compiler_params=pltpu.CompilerParams(
            dimension_semantics=("parallel",)),
    )(x, w1, b1, w2, b2, w3, b3)

    return out


def init_actor_params(key, num_states, num_actions, hidden1=400, hidden2=400):
    """Deterministic init mimicking PyTorch nn.Linear default:
    U(-1/sqrt(fan_in), 1/sqrt(fan_in)). Weights bf16 [in, out]; b1/b2 bf16."""
    def linear(key, fan_in, fan_out, bias_dtype):
        kw, kb = jax.random.split(key)
        bound = 1.0 / jnp.sqrt(float(fan_in))
        w = jax.random.uniform(kw, (fan_in, fan_out), jnp.float32, -bound, bound)
        b = jax.random.uniform(kb, (1, fan_out), jnp.float32, -bound, bound)
        return w.astype(jnp.bfloat16), b.astype(bias_dtype)

    k1, k2, k3 = jax.random.split(key, 3)
    w1, b1 = linear(k1, num_states, hidden1, jnp.bfloat16)
    w2, b2 = linear(k2, hidden1, hidden2, jnp.bfloat16)
    w3, b3 = linear(k3, hidden2, num_actions, jnp.float32)
    return {"w1": w1, "b1": b1, "w2": w2, "b2": b2, "w3": w3, "b3": b3}


def actor_reference(x, params):
    """Pure-JAX reference matching the kernel's bf16-weight / bf16-epilogue math."""
    def dense(h, w):
        return jnp.dot(h.astype(jnp.bfloat16), w,
                       preferred_element_type=jnp.float32)

    h = _leaky_relu(dense(x, params["w1"]).astype(jnp.bfloat16) + params["b1"])
    h = _leaky_relu(dense(h, params["w2"]).astype(jnp.bfloat16) + params["b2"])
    h3 = dense(h, params["w3"]) + params["b3"]
    return jnp.tanh(h3)


if __name__ == "__main__":
    key = jax.random.PRNGKey(0)
    k_param, k_x = jax.random.split(key)

    batch = 16           # small test batch; wrapper handles any B (ragged blocks masked)
    num_states = 32
    num_actions = 8
    hidden1 = hidden2 = 400  # module defaults

    params = init_actor_params(k_param, num_states, num_actions, hidden1, hidden2)
    x = jax.random.normal(k_x, (batch, num_states), dtype=jnp.float32)

    out = actor_forward(x, params)
    out = jax.block_until_ready(out)

    ref = actor_reference(x, params)
    assert out.shape == (batch, num_actions)
    assert jnp.allclose(out, ref, atol=2e-3, rtol=2e-3), (
        float(jnp.max(jnp.abs(out - ref))))

    print("KERNEL_OK")
</pallas_src>

<mosaic_0001>
module attributes {stable_mosaic.version = 11 : i64} {
  func.func @actor_kernel(%arg0: i32, %arg1: memref<8x32xf32, #tpu.memory_space<vmem>>, %arg2: memref<32x400xbf16, #tpu.memory_space<vmem>>, %arg3: memref<1x400xbf16, #tpu.memory_space<vmem>>, %arg4: memref<400x400xbf16, #tpu.memory_space<vmem>>, %arg5: memref<1x400xbf16, #tpu.memory_space<vmem>>, %arg6: memref<400x8xbf16, #tpu.memory_space<vmem>>, %arg7: memref<1x8xf32, #tpu.memory_space<vmem>>, %arg8: memref<8x8xf32, #tpu.memory_space<vmem>>) attributes {dimension_semantics = [#tpu.dimension_semantics<parallel>], iteration_bounds = array<i64: 2>, scalar_prefetch = 0 : i64, scratch_operands = 0 : i64, tpu.core_type = #tpu.core_type<tc>, window_params = [{transform_indices = @transform_0, window_bounds = array<i64: 8, 32>}, {pipeline_mode = #tpu.pipeline_mode<synchronous>, transform_indices = @transform_1, window_bounds = array<i64: 32, 400>}, {pipeline_mode = #tpu.pipeline_mode<synchronous>, transform_indices = @transform_2, window_bounds = array<i64: 1, 400>}, {pipeline_mode = #tpu.pipeline_mode<synchronous>, transform_indices = @transform_3, window_bounds = array<i64: 400, 400>}, {pipeline_mode = #tpu.pipeline_mode<synchronous>, transform_indices = @transform_4, window_bounds = array<i64: 1, 400>}, {pipeline_mode = #tpu.pipeline_mode<synchronous>, transform_indices = @transform_5, window_bounds = array<i64: 400, 8>}, {pipeline_mode = #tpu.pipeline_mode<synchronous>, transform_indices = @transform_6, window_bounds = array<i64: 1, 8>}, {transform_indices = @transform_7, window_bounds = array<i64: 8, 8>}]} {
    %c0 = arith.constant 0 : index
    %c0_0 = arith.constant 0 : index
    %0 = vector.load %arg1[%c0, %c0_0] : memref<8x32xf32, #tpu.memory_space<vmem>>, vector<8x32xf32>
    %1 = arith.truncf %0 : vector<8x32xf32> to vector<8x32xbf16>
    %c0_1 = arith.constant 0 : index
    %c0_2 = arith.constant 0 : index
    %2 = vector.load %arg2[%c0_1, %c0_2] : memref<32x400xbf16, #tpu.memory_space<vmem>>, vector<32x400xbf16>
    %cst = arith.constant dense<0.000000e+00> : vector<8x400xf32>
    %3 = tpu.matmul %1, %2, %cst {dimension_numbers = #tpu.dot_dimension_numbers<[1], [0], [0], [1], [0, 0, 1, 1], [], []>} : vector<8x32xbf16>, vector<32x400xbf16>, vector<8x400xf32> -> vector<8x400xf32>
    %4 = arith.truncf %3 : vector<8x400xf32> to vector<8x400xbf16>
    %c0_3 = arith.constant 0 : index
    %c0_4 = arith.constant 0 : index
    %5 = vector.load %arg3[%c0_3, %c0_4] : memref<1x400xbf16, #tpu.memory_space<vmem>>, vector<1x400xbf16>
    %6 = vector.broadcast %5 : vector<1x400xbf16> to vector<8x400xbf16>
    %7 = arith.addf %4, %6 : vector<8x400xbf16>
    %cst_5 = arith.constant 1.000980e-02 : bf16
    %8 = vector.broadcast %cst_5 : bf16 to vector<8x400xbf16>
    %9 = arith.mulf %8, %7 : vector<8x400xbf16>
    %10 = arith.maximumf %7, %9 : vector<8x400xbf16>
    %c0_6 = arith.constant 0 : index
    %c0_7 = arith.constant 0 : index
    %11 = vector.load %arg4[%c0_6, %c0_7] : memref<400x400xbf16, #tpu.memory_space<vmem>>, vector<400x400xbf16>
    %cst_8 = arith.constant dense<0.000000e+00> : vector<8x400xf32>
    %12 = tpu.matmul %10, %11, %cst_8 {dimension_numbers = #tpu.dot_dimension_numbers<[1], [0], [0], [1], [0, 0, 1, 1], [], []>} : vector<8x400xbf16>, vector<400x400xbf16>, vector<8x400xf32> -> vector<8x400xf32>
    %13 = arith.truncf %12 : vector<8x400xf32> to vector<8x400xbf16>
    %c0_9 = arith.constant 0 : index
    %c0_10 = arith.constant 0 : index
    %14 = vector.load %arg5[%c0_9, %c0_10] : memref<1x400xbf16, #tpu.memory_space<vmem>>, vector<1x400xbf16>
    %15 = vector.broadcast %14 : vector<1x400xbf16> to vector<8x400xbf16>
    %16 = arith.addf %13, %15 : vector<8x400xbf16>
    %cst_11 = arith.constant 1.000980e-02 : bf16
    %17 = vector.broadcast %cst_11 : bf16 to vector<8x400xbf16>
    %18 = arith.mulf %17, %16 : vector<8x400xbf16>
    %19 = arith.maximumf %16, %18 : vector<8x400xbf16>
    %c0_12 = arith.constant 0 : index
    %c0_13 = arith.constant 0 : index
    %20 = vector.load %arg6[%c0_12, %c0_13] : memref<400x8xbf16, #tpu.memory_space<vmem>>, vector<400x8xbf16>
    %cst_14 = arith.constant dense<0.000000e+00> : vector<8x8xf32>
    %21 = tpu.matmul %19, %20, %cst_14 {dimension_numbers = #tpu.dot_dimension_numbers<[1], [0], [0], [1], [0, 0, 1, 1], [], []>} : vector<8x400xbf16>, vector<400x8xbf16>, vector<8x8xf32> -> vector<8x8xf32>
    %c0_15 = arith.constant 0 : index
    %c0_16 = arith.constant 0 : index
    %22 = vector.load %arg7[%c0_15, %c0_16] : memref<1x8xf32, #tpu.memory_space<vmem>>, vector<1x8xf32>
    %23 = vector.broadcast %22 : vector<1x8xf32> to vector<8x8xf32>
    %24 = arith.addf %21, %23 : vector<8x8xf32>
    %25 = math.tanh %24 : vector<8x8xf32>
    %c0_17 = arith.constant 0 : index
    %c0_18 = arith.constant 0 : index
    %26 = vector.load %arg8[%c0_17, %c0_18] : memref<8x8xf32, #tpu.memory_space<vmem>>, vector<8x8xf32>
    tpu.vector_store %arg8[%c0_17, %c0_18], %25 {strides = array<i32>} : memref<8x8xf32, #tpu.memory_space<vmem>>, vector<8x8xf32>,
    return
  }
  func.func @transform_0(%arg0: i32) -> (i32, i32) {
    %c0_i32 = arith.constant 0 : i32
    %c0_i32_0 = arith.constant 0 : i32
    return %arg0, %c0_i32 : i32, i32
  }
  func.func @transform_1(%arg0: i32) -> (i32, i32) {
    %c0_i32 = arith.constant 0 : i32
    %c0_i32_0 = arith.constant 0 : i32
    %c0_i32_1 = arith.constant 0 : i32
    return %c0_i32, %c0_i32_0 : i32, i32
  }
  func.func @transform_2(%arg0: i32) -> (i32, i32) {
    %c0_i32 = arith.constant 0 : i32
    %c0_i32_0 = arith.constant 0 : i32
    %c0_i32_1 = arith.constant 0 : i32
    return %c0_i32, %c0_i32_0 : i32, i32
  }
  func.func @transform_3(%arg0: i32) -> (i32, i32) {
    %c0_i32 = arith.constant 0 : i32
    %c0_i32_0 = arith.constant 0 : i32
    %c0_i32_1 = arith.constant 0 : i32
    return %c0_i32, %c0_i32_0 : i32, i32
  }
  func.func @transform_4(%arg0: i32) -> (i32, i32) {
    %c0_i32 = arith.constant 0 : i32
    %c0_i32_0 = arith.constant 0 : i32
    %c0_i32_1 = arith.constant 0 : i32
    return %c0_i32, %c0_i32_0 : i32, i32
  }
  func.func @transform_5(%arg0: i32) -> (i32, i32) {
    %c0_i32 = arith.constant 0 : i32
    %c0_i32_0 = arith.constant 0 : i32
    %c0_i32_1 = arith.constant 0 : i32
    return %c0_i32, %c0_i32_0 : i32, i32
  }
  func.func @transform_6(%arg0: i32) -> (i32, i32) {
    %c0_i32 = arith.constant 0 : i32
    %c0_i32_0 = arith.constant 0 : i32
    %c0_i32_1 = arith.constant 0 : i32
    return %c0_i32, %c0_i32_0 : i32, i32
  }
  func.func @transform_7(%arg0: i32) -> (i32, i32) {
    %c0_i32 = arith.constant 0 : i32
    %c0_i32_0 = arith.constant 0 : i32
    return %arg0, %c0_i32 : i32, i32
  }
}

</mosaic_0001>

<llo_original>
// kernel: tpu_custom_call.1
$region0: #{tpu_custom_call.1}
  #allocation0 [shape = 'u32[]', space=smem, size = 0x4, offset = 0x4, fixed_abs, tag = 'smem constant byte address 0x4 - core index']
  #allocation1 [shape = 'u32[144,128]{1,0:T(1,128)}', space=vmem, size = 0x12000, scoped, tag = 'internal scratch']
  %s0 = inlined_call_operand.vmem [shape: f32[16,32], index: 0, kind: input, shape index: {}]
  %s1 = inlined_call_operand.vmem [shape: bf16[32,400], index: 1, kind: input, shape index: {}]
  %s2 = inlined_call_operand.vmem [shape: bf16[1,400], index: 2, kind: input, shape index: {}]
  %s3 = inlined_call_operand.hbm [shape: bf16[400,400], index: 3, kind: input, shape index: {}]
  %s4 = inlined_call_operand.vmem [shape: bf16[1,400], index: 4, kind: input, shape index: {}]
  %s5 = inlined_call_operand.vmem [shape: bf16[400,8], index: 5, kind: input, shape index: {}]
  %s6 = inlined_call_operand.vmem [shape: f32[1,8], index: 6, kind: input, shape index: {}]
  %s7 = inlined_call_operand.vmem [shape: f32[16,8], index: 7, kind: output, shape index: {}]
  %s8 = sld [smem:[#allocation0]]
  $region65: #{tpu_custom_call.1} parent=0
    _
  %s10 = ssub.s32 1, %s8
  %s11 = scalar_select 0, %s10, %s8
  $region1: #{tpu_custom_call.1} parent=0
    #allocation2 [shape = 'u8[409600]{0}', space=vmem, size = 0x64000, scoped, tag = 'input window, operand 3, single buffered']
    #allocation3 [shape = 's32[2]{0}', space=sflag, size = 0x8, scoped, tag = 'scoped memory for tpu_custom_call.1']
    %12 = vsyncpa [#allocation3], 0
    loop: start=0, step=1, limit=4
    $region2: #{tpu_custom_call.1} parent=1 // loop_pre_header
      _
    $region3: #{tpu_custom_call.1} parent=1 // loop_header
      %s14 = sphi 0, %s18
      %p15 = scmp.ge.s32.totalorder %s14, 4
      %s24 = sphi 0, %s26
      %s27 = sphi 0, %s24
      %s28 = sphi 0, %s27
      %s44 = sphi 0, %s28
      %s48 = sphi 0, %s48
      %s50 = sphi 0, %s48
      %s51 = sphi 0, %s50
      %s65 = sphi 0, %s51
      %s69 = sphi 0, %s69
      %s71 = sphi 0, %s69
      %s72 = sphi 0, %s71
      %s86 = sphi 0, %s72
      %s90 = sphi 0, %s90
      %s92 = sphi 0, %s90
      %s93 = sphi 0, %s92
      %s107 = sphi 0, %s93
      %s111 = sphi 0, %s111
      %s113 = sphi 0, %s111
      %s114 = sphi 0, %s113
      %s128 = sphi 0, %s114
      %s132 = sphi 0, %s132
      %s134 = sphi 0, %s132
      %s135 = sphi 0, %s134
      %s149 = sphi 0, %s135
      %s153 = sphi 0, %s153
      %s155 = sphi 0, %s153
      %s156 = sphi 0, %s155
      %s170 = sphi 0, %s156
      %s176 = sphi 0, %s178
      %s179 = sphi 0, %s176
      %s180 = sphi 0, %s179
      %s196 = sphi 0, %s180
    $region4: #{tpu_custom_call.1} parent=1 // loop_header_branch
      %17 = sbr.rel (%p15) target = $region8
    $region5: #{tpu_custom_call.1} parent=1 // loop_body
      %s19 = ssub.s32 %s14, 1
      %s20 = ssub.s32 %s14, 2
      %s21 = sadd.s32 %s14, 1
      %s22 = ssub.s32 %s14, %s21
      %p23 = scmp.eq.s32.totalorder %s22, 0
      %s25 = sadd.s32 %s24, 1
      %s26 = scalar_select %p23, %s24, %s25
      %p29 = pneg %p23
      %p30 = scmp.eq.s32.totalorder %s14, 1
      %p31 = por %p29, %p30
      %p32 = scmp.ne.s32.totalorder %s24, %s27
      %p33 = scmp.eq.s32.totalorder %s14, 0
      %p34 = por %p32, %p33
      %p35 = scmp.ne.s32.totalorder %s24, %s27
      %p36 = scmp.eq.s32.totalorder %s19, 1
      %p37 = por %p35, %p36
      %p38 = scmp.ne.s32.totalorder %s27, %s28
      %p39 = scmp.eq.s32.totalorder %s19, 0
      %p40 = por %p38, %p39
      %p41 = scmp.ne.s32.totalorder %s27, %s28
      %p42 = scmp.eq.s32.totalorder %s20, 1
      %p43 = por %p41, %p42
      %p45 = scmp.ne.s32.totalorder %s28, %s44
      %p46 = scmp.eq.s32.totalorder %s20, 0
      %p47 = por %p45, %p46
      %s49 = sadd.s32 %s48, 1
      %p52 = scmp.eq.s32.totalorder %s14, 1
      %p53 = scmp.ne.s32.totalorder %s48, %s50
      %p54 = scmp.eq.s32.totalorder %s14, 0
      %p55 = por %p53, %p54
      %p56 = scmp.ne.s32.totalorder %s48, %s50
      %p57 = scmp.eq.s32.totalorder %s19, 1
      %p58 = por %p56, %p57
      %p59 = scmp.ne.s32.totalorder %s50, %s51
      %p60 = scmp.eq.s32.totalorder %s19, 0
      %p61 = por %p59, %p60
      %p62 = scmp.ne.s32.totalorder %s50, %s51
      %p63 = scmp.eq.s32.totalorder %s20, 1
      %p64 = por %p62, %p63
      %p66 = scmp.ne.s32.totalorder %s51, %s65
      %p67 = scmp.eq.s32.totalorder %s20, 0
      %p68 = por %p66, %p67
      %s70 = sadd.s32 %s69, 1
      %p73 = scmp.eq.s32.totalorder %s14, 1
      %p74 = scmp.ne.s32.totalorder %s69, %s71
      %p75 = scmp.eq.s32.totalorder %s14, 0
      %p76 = por %p74, %p75
      %p77 = scmp.ne.s32.totalorder %s69, %s71
      %p78 = scmp.eq.s32.totalorder %s19, 1
      %p79 = por %p77, %p78
      %p80 = scmp.ne.s32.totalorder %s71, %s72
      %p81 = scmp.eq.s32.totalorder %s19, 0
      %p82 = por %p80, %p81
      %p83 = scmp.ne.s32.totalorder %s71, %s72
      %p84 = scmp.eq.s32.totalorder %s20, 1
      %p85 = por %p83, %p84
      %p87 = scmp.ne.s32.totalorder %s72, %s86
      %p88 = scmp.eq.s32.totalorder %s20, 0
      %p89 = por %p87, %p88
      %s91 = sadd.s32 %s90, 1
      %p94 = scmp.eq.s32.totalorder %s14, 1
      %p95 = scmp.ne.s32.totalorder %s90, %s92
      %p96 = scmp.eq.s32.totalorder %s14, 0
      %p97 = por %p95, %p96
      %p98 = scmp.ne.s32.totalorder %s90, %s92
      %p99 = scmp.eq.s32.totalorder %s19, 1
      %p100 = por %p98, %p99
      %p101 = scmp.ne.s32.totalorder %s92, %s93
      %p102 = scmp.eq.s32.totalorder %s19, 0
      %p103 = por %p101, %p102
      %p104 = scmp.ne.s32.totalorder %s92, %s93
      %p105 = scmp.eq.s32.totalorder %s20, 1
      %p106 = por %p104, %p105
      %p108 = scmp.ne.s32.totalorder %s93, %s107
      %p109 = scmp.eq.s32.totalorder %s20, 0
      %p110 = por %p108, %p109
      %s112 = sadd.s32 %s111, 1
      %p115 = scmp.eq.s32.totalorder %s14, 1
      %p116 = scmp.ne.s32.totalorder %s111, %s113
      %p117 = scmp.eq.s32.totalorder %s14, 0
      %p118 = por %p116, %p117
      %p119 = scmp.ne.s32.totalorder %s111, %s113
      %p120 = scmp.eq.s32.totalorder %s19, 1
      %p121 = por %p119, %p120
      %p122 = scmp.ne.s32.totalorder %s113, %s114
      %p123 = scmp.eq.s32.totalorder %s19, 0
      %p124 = por %p122, %p123
      %p125 = scmp.ne.s32.totalorder %s113, %s114
      %p126 = scmp.eq.s32.totalorder %s20, 1
      %p127 = por %p125, %p126
      %p129 = scmp.ne.s32.totalorder %s114, %s128
      %p130 = scmp.eq.s32.totalorder %s20, 0
      %p131 = por %p129, %p130
      %s133 = sadd.s32 %s132, 1
      %p136 = scmp.eq.s32.totalorder %s14, 1
      %p137 = scmp.ne.s32.totalorder %s132, %s134
      %p138 = scmp.eq.s32.totalorder %s14, 0
      %p139 = por %p137, %p138
      %p140 = scmp.ne.s32.totalorder %s132, %s134
      %p141 = scmp.eq.s32.totalorder %s19, 1
      %p142 = por %p140, %p141
      %p143 = scmp.ne.s32.totalorder %s134, %s135
      %p144 = scmp.eq.s32.totalorder %s19, 0
      %p145 = por %p143, %p144
      %p146 = scmp.ne.s32.totalorder %s134, %s135
      %p147 = scmp.eq.s32.totalorder %s20, 1
      %p148 = por %p146, %p147
      %p150 = scmp.ne.s32.totalorder %s135, %s149
      %p151 = scmp.eq.s32.totalorder %s20, 0
      %p152 = por %p150, %p151
      %s154 = sadd.s32 %s153, 1
      %p157 = scmp.eq.s32.totalorder %s14, 1
      %p158 = scmp.ne.s32.totalorder %s153, %s155
      %p159 = scmp.eq.s32.totalorder %s14, 0
      %p160 = por %p158, %p159
      %p161 = scmp.ne.s32.totalorder %s153, %s155
      %p162 = scmp.eq.s32.totalorder %s19, 1
      %p163 = por %p161, %p162
      %p164 = scmp.ne.s32.totalorder %s155, %s156
      %p165 = scmp.eq.s32.totalorder %s19, 0
      %p166 = por %p164, %p165
      %p167 = scmp.ne.s32.totalorder %s155, %s156
      %p168 = scmp.eq.s32.totalorder %s20, 1
      %p169 = por %p167, %p168
      %p171 = scmp.ne.s32.totalorder %s156, %s170
      %p172 = scmp.eq.s32.totalorder %s20, 0
      %p173 = por %p171, %p172
      %s174 = ssub.s32 %s14, %s21
      %p175 = scmp.eq.s32.totalorder %s174, 0
      %s177 = sadd.s32 %s176, 1
      %s178 = scalar_select %p175, %s176, %s177
      %p181 = pneg %p175
      %p182 = scmp.eq.s32.totalorder %s14, 1
      %p183 = por %p181, %p182
      %p184 = scmp.ne.s32.totalorder %s176, %s179
      %p185 = scmp.eq.s32.totalorder %s14, 0
      %p186 = por %p184, %p185
      %p187 = scmp.ne.s32.totalorder %s176, %s179
      %p188 = scmp.eq.s32.totalorder %s19, 1
      %p189 = por %p187, %p188
      %p190 = scmp.ne.s32.totalorder %s179, %s180
      %p191 = scmp.eq.s32.totalorder %s19, 0
      %p192 = por %p190, %p191
      %p193 = scmp.ne.s32.totalorder %s179, %s180
      %p194 = scmp.eq.s32.totalorder %s20, 1
      %p195 = por %p193, %p194
      %p197 = scmp.ne.s32.totalorder %s180, %s196
      %p198 = scmp.eq.s32.totalorder %s20, 0
      %p199 = por %p197, %p198
      %p200 = scmp.le.s32.totalorder 1, %s14
      %p201 = scmp.lt.s32.totalorder %s14, 3
      %p202 = pnand %p200, %p201
      %p203 = pneg %p202
      // Predicated region
      $region9: #{tpu_custom_call.1} parent=5 // pred_check
        _
      $region10: #{tpu_custom_call.1} parent=5 // pred_check_branch
        %205 = sbr.rel (%p202) target = $region12
      $region11: #{tpu_custom_call.1} parent=5 // pred_region
        %s206 = ssub.s32 %s14, 1
        // Predicated region
        $region13: #{tpu_custom_call.1} parent=11 // pred_check
          %p207 = pneg %p61
        $region14: #{tpu_custom_call.1} parent=11 // pred_check_branch
          %209 = sbr.rel (%p207) target = $region16
        $region15: #{tpu_custom_call.1} parent=11 // pred_region
          _
        $region16: #{tpu_custom_call.1} parent=11 // pred_fallthru
          _
        // Predicated region
        $region17: #{tpu_custom_call.1} parent=11 // pred_check
          %p210 = pneg %p82
        $region18: #{tpu_custom_call.1} parent=11 // pred_check_branch
          %212 = sbr.rel (%p210) target = $region20
        $region19: #{tpu_custom_call.1} parent=11 // pred_region
          _
        $region20: #{tpu_custom_call.1} parent=11 // pred_fallthru
          _
        // Predicated region
        $region21: #{tpu_custom_call.1} parent=11 // pred_check
          %p213 = pneg %p103
        $region22: #{tpu_custom_call.1} parent=11 // pred_check_branch
          %215 = sbr.rel (%p213) target = $region24
        $region23: #{tpu_custom_call.1} parent=11 // pred_region
          %s217 = ssub.s32 12800, 12800
          %218 = vsyncadd [#allocation3], %s217
          %s219 = sshll.u32 [#allocation2], 4
          %s220 = int_to_ptr.vmem [resolvable:$true] %s219
          %225 = dma.hbm_to_vmem [thread:$0]  %s3, 12800, %s220, [#allocation3], 256, 256, 16
        $region24: #{tpu_custom_call.1} parent=11 // pred_fallthru
          _
        // Predicated region
        $region25: #{tpu_custom_call.1} parent=11 // pred_check
          %p226 = pneg %p124
        $region26: #{tpu_custom_call.1} parent=11 // pred_check_branch
          %228 = sbr.rel (%p226) target = $region28
        $region27: #{tpu_custom_call.1} parent=11 // pred_region
          _
        $region28: #{tpu_custom_call.1} parent=11 // pred_fallthru
          _
        // Predicated region
        $region29: #{tpu_custom_call.1} parent=11 // pred_check
          %p229 = pneg %p145
        $region30: #{tpu_custom_call.1} parent=11 // pred_check_branch
          %231 = sbr.rel (%p229) target = $region32
        $region31: #{tpu_custom_call.1} parent=11 // pred_region
          _
        $region32: #{tpu_custom_call.1} parent=11 // pred_fallthru
          _
        // Predicated region
        $region33: #{tpu_custom_call.1} parent=11 // pred_check
          %p232 = pneg %p166
        $region34: #{tpu_custom_call.1} parent=11 // pred_check_branch
          %234 = sbr.rel (%p232) target = $region36
        $region35: #{tpu_custom_call.1} parent=11 // pred_region
          _
        $region36: #{tpu_custom_call.1} parent=11 // pred_fallthru
          _
      $region12: #{tpu_custom_call.1} parent=5 // pred_fallthru
        _
      %p235 = scmp.lt.s32.totalorder %s14, 2
      // Predicated region
      $region37: #{tpu_custom_call.1} parent=5 // pred_check
        %p236 = pneg %p235
      $region38: #{tpu_custom_call.1} parent=5 // pred_check_branch
        %238 = sbr.rel (%p236) target = $region40
      $region39: #{tpu_custom_call.1} parent=5 // pred_region
        // Predicated region
        $region41: #{tpu_custom_call.1} parent=39 // pred_check
          %p239 = pneg %p34
        $region42: #{tpu_custom_call.1} parent=39 // pred_check_branch
          %241 = sbr.rel (%p239) target = $region44
        $region43: #{tpu_custom_call.1} parent=39 // pred_region
          %p242 = scmp.lt.s32.totalorder %s14, 1
          %s243 = scalar_select %p242, %s14, 1
          %s244 = smul.addr %s243, 8
          %s245 = scalar_lea.vmem %s0, %s244
        $region44: #{tpu_custom_call.1} parent=39 // pred_fallthru
          _
      $region40: #{tpu_custom_call.1} parent=5 // pred_fallthru
        _
      %p246 = scmp.le.s32.totalorder 1, %s14
      %p247 = scmp.lt.s32.totalorder %s14, 3
      %p248 = pnand %p246, %p247
      %p249 = pneg %p248
      // Predicated region
      $region45: #{tpu_custom_call.1} parent=5 // pred_check
        _
      $region46: #{tpu_custom_call.1} parent=5 // pred_check_branch
        %251 = sbr.rel (%p248) target = $region48
      $region47: #{tpu_custom_call.1} parent=5 // pred_region
        %s252 = ssub.s32 %s14, 1
        // Predicated region
        $region49: #{tpu_custom_call.1} parent=47 // pred_check
          %p253 = pneg %p103
        $region50: #{tpu_custom_call.1} parent=47 // pred_check_branch
          %255 = sbr.rel (%p253) target = $region52
        $region51: #{tpu_custom_call.1} parent=47 // pred_region
          %256 = dma.done [#allocation3], 12800
        $region52: #{tpu_custom_call.1} parent=47 // pred_fallthru
          _
        %p257 = scmp.lt.s32.totalorder %s19, 1
        %s258 = scalar_select %p257, %s19, 1
        %s259 = smul.addr %s258, 8
        %s260 = scalar_lea.vmem %s0, %s259
        %p261 = pneg %p40
        %p262 = pneg %p37
        %p263 = pneg %p61
        %p264 = pneg %p58
        %p265 = pneg %p82
        %p266 = pneg %p79
        %p267 = pneg %p103
        %p268 = pneg %p100
        %p269 = pneg %p124
        %p270 = pneg %p121
        %p271 = pneg %p145
        %p272 = pneg %p142
        %p273 = pneg %p166
        %p274 = pneg %p163
        %p275 = pneg %p192
        %p276 = pneg %p189
        %p277 = scmp.lt.s32.totalorder %s19, 1
        %s278 = scalar_select %p277, %s19, 1
        %s279 = smul.addr %s278, 8
        %s280 = scalar_lea.vmem %s7, %s279
        %p281 = scmp.lt.s32.totalorder %s19, 1
        %s282 = scalar_select %p281, %s19, 1
        %s283 = smul.addr %s282, 8
        %s284 = scalar_lea.vmem %s0, %s283
        %p285 = scmp.lt.s32.totalorder %s19, 1
        %s286 = scalar_select %p285, %s19, 1
        %s287 = smul.addr %s286, 8
        %s288 = scalar_lea.vmem %s7, %s287
        %v291 = vld [vmem:[%s284] sm:$0xff]
        %v292 = vpack.c.bf16 %v291, %v291
        %v293 = vld [vmem:[%s1] sm:$0xff]
        %v294 = vld [vmem:[%s1 + $0x8] sm:$0xff]
        %v295 = vld [vmem:[%s1 + $0x10] sm:$0xff]
        %v296 = vld [vmem:[%s1 + $0x18] sm:$0xff]
        %v297 = vld [vmem:[%s1 + $0x20] sm:$0xff]
        %v298 = vld [vmem:[%s1 + $0x28] sm:$0xff]
        %v299 = vld [vmem:[%s1 + $0x30] sm:$0xff]
        %v300 = vld [vmem:[%s1 + $0x38] sm:$0xff]
        %v309 = vunpack.c.l.b16 %v293
        %v310 = vunpack.c.h.b16 %v293
        %v311 = vunpack.c.l.b16 %v294
        %v312 = vunpack.c.h.b16 %v294
        %v313 = vunpack.c.l.b16 %v295
        %v314 = vunpack.c.h.b16 %v295
        %v315 = vunpack.c.l.b16 %v296
        %v316 = vunpack.c.h.b16 %v296
        %v317 = vunpack.c.l.b16 %v297
        %v318 = vunpack.c.h.b16 %v297
        %v319 = vunpack.c.l.b16 %v298
        %v320 = vunpack.c.h.b16 %v298
        %v321 = vunpack.c.l.b16 %v299
        %v322 = vunpack.c.h.b16 %v299
        %v323 = vunpack.c.l.b16 %v300
        %v324 = vunpack.c.h.b16 %v300
        %v325 = vpack.c.b16 %v313, %v309
        %v326 = vpack.c.b16 %v314, %v310
        %v327 = vpack.c.b16 %v315, %v311
        %v328 = vpack.c.b16 %v316, %v312
        %v329 = vpack.c.b16 %v321, %v317
        %v330 = vpack.c.b16 %v322, %v318
        %v331 = vpack.c.b16 %v323, %v319
        %v332 = vpack.c.b16 %v324, %v320
        %vm341 = vcmask 261120
        %v343 = vsel %vm341, %v292, 0
        %345 = vmatprep.subr.bf16.mxu0 0
        %346 = vmatpush1.bf16.msra.mxu0 0
        %347 = vmatprep.subr.bf16.mxu0 0
        %348 = vmatpush1.bf16.msra.mxu0 0
        %349 = vmatprep.subr.bf16.mxu0 0
        %350 = vmatpush1.bf16.msra.mxu0 0
        %351 = vmatprep.subr.bf16.mxu0 0
        %352 = vmatpush1.bf16.msra.mxu0 0
        %353 = vmatprep.subr.bf16.mxu0 0
        %354 = vmatpush1.bf16.msra.mxu0 0
        %355 = vmatprep.subr.bf16.mxu0 0
        %356 = vmatpush1.bf16.msra.mxu0 0
        %357 = vmatprep.subr.bf16.mxu0 %v330
        %358 = vmatpush1.bf16.msra.mxu0 %v329
        %359 = vmatprep.subr.bf16.mxu0 %v326
        %360 = vmatpush1.bf16.msra.mxu0 %v325
        %361 = vmatprep.subr.bf16.mxu0 0
        %362 = vmatpush2.bf16.msra.mxu0 0
        %363 = vmatprep.subr.bf16.mxu0 0
        %364 = vmatpush2.bf16.msra.mxu0 0
        %365 = vmatprep.subr.bf16.mxu0 0
        %366 = vmatpush2.bf16.msra.mxu0 0
        %367 = vmatprep.subr.bf16.mxu0 0
        %368 = vmatpush2.bf16.msra.mxu0 0
        %369 = vmatprep.subr.bf16.mxu0 0
        %370 = vmatpush2.bf16.msra.mxu0 0
        %371 = vmatprep.subr.bf16.mxu0 0
        %372 = vmatpush2.bf16.msra.mxu0 0
        %373 = vmatprep.subr.bf16.mxu0 0
        %374 = vmatpush2.bf16.msra.mxu0 0
        %375 = vmatprep.subr.bf16.mxu0 0
        %376 = vmatpush2.bf16.msra.mxu0 0
        %377 = vmatprep.mubr.bf16.mxu0 0
        %378 = vmatmul.mubr.bf16.gmra.mxu0 %v343
        %v379 = vpop.f32.mrf.mxu0
        %v380 = vadd.f32 0.0, %v379
        %v381 = vpop.f32.mrf.mxu0
        %v382 = vadd.f32 0.0, %v381
        %v383 = vpop.f32.mrf.mxu0
        %v384 = vpop.f32.mrf.mxu0
        %385 = vdwg.mxu0
        %386 = vmatprep.subr.bf16.mxu0 0
        %387 = vmatpush1.bf16.msra.mxu0 0
        %388 = vmatprep.subr.bf16.mxu0 0
        %389 = vmatpush1.bf16.msra.mxu0 0
        %390 = vmatprep.subr.bf16.mxu0 0
        %391 = vmatpush1.bf16.msra.mxu0 0
        %392 = vmatprep.subr.bf16.mxu0 0
        %393 = vmatpush1.bf16.msra.mxu0 0
        %394 = vmatprep.subr.bf16.mxu0 0
        %395 = vmatpush1.bf16.msra.mxu0 0
        %396 = vmatprep.subr.bf16.mxu0 0
        %397 = vmatpush1.bf16.msra.mxu0 0
        %398 = vmatprep.subr.bf16.mxu0 %v332
        %399 = vmatpush1.bf16.msra.mxu0 %v331
        %400 = vmatprep.subr.bf16.mxu0 %v328
        %401 = vmatpush1.bf16.msra.mxu0 %v327
        %402 = vmatprep.subr.bf16.mxu0 0
        %403 = vmatpush2.bf16.msra.mxu0 0
        %404 = vmatprep.subr.bf16.mxu0 0
        %405 = vmatpush2.bf16.msra.mxu0 0
        %406 = vmatprep.subr.bf16.mxu0 0
        %407 = vmatpush2.bf16.msra.mxu0 0
        %408 = vmatprep.subr.bf16.mxu0 0
        %409 = vmatpush2.bf16.msra.mxu0 0
        %410 = vmatprep.subr.bf16.mxu0 0
        %411 = vmatpush2.bf16.msra.mxu0 0
        %412 = vmatprep.subr.bf16.mxu0 0
        %413 = vmatpush2.bf16.msra.mxu0 0
        %414 = vmatprep.subr.bf16.mxu0 0
        %415 = vmatpush2.bf16.msra.mxu0 0
        %416 = vmatprep.subr.bf16.mxu0 0
        %417 = vmatpush2.bf16.msra.mxu0 0
        %418 = vmatprep.mubr.bf16.mxu0 0
        %419 = vmatmul.mubr.bf16.gmra.mxu0 %v343
        %v420 = vpop.f32.mrf.mxu0
        %v421 = vadd.f32 0.0, %v420
        %v422 = vpop.f32.mrf.mxu0
        %v423 = vadd.f32 0.0, %v422
        %v424 = vpop.f32.mrf.mxu0
        %v425 = vpop.f32.mrf.mxu0
        %426 = vdwg.mxu0
        %v427 = vpack.c.bf16 %v380, %v380
        %v428 = vpack.c.bf16 %v382, %v382
        %v429 = vpack.c.bf16 %v421, %v421
        %v430 = vpack.c.bf16 %v423, %v423
        %v431 = vld [vmem:[%s2] sm:$0xf]
        %v434 = vunpack.c.l.s4 1966171168
        %v435 = vunpack.c.0.s8 %v434
        %v436 = vlaneseq
        %v437 = vshrl.u32 %v436, 7
        %v438 = vsub.s32 %v435, %v437
        %v439 = vrot.slane %v431, %v438
        %v440 = vcombine.high %v439, %v439
        %v442 = vunpack.c.l.s4 1966171168
        %v443 = vunpack.c.0.s8 %v442
        %v444 = vlaneseq
        %v445 = vshrl.u32 %v444, 7
        %v446 = vsub.s32 %v443, %v445
        %v447 = vrot.slane %v439, %v446
        %v449 = vunpack.c.l.s4 1966171168
        %v450 = vunpack.c.0.s8 %v449
        %v451 = vlaneseq
        %v452 = vshrl.u32 %v451, 7
        %v453 = vsub.s32 %v450, %v452
        %v454 = vrot.slane %v440, %v453
        %v455 = vcombine.high %v447, %v447
        %v456 = vcombine.high %v454, %v454
        %v458 = vpack.i.b16 %v447, %v447
        %v460 = vlaneseq
        %v461 = vshrl.u32 %v460, 7
        %v462 = vsub.s32 0, %v461
        %v463 = vrot.slane %v458, %v462
        %v465 = vpack.i.b16 %v454, %v454
        %v467 = vlaneseq
        %v468 = vshrl.u32 %v467, 7
        %v469 = vsub.s32 0, %v468
        %v470 = vrot.slane %v465, %v469
        %v472 = vpack.i.b16 %v455, %v455
        %v474 = vlaneseq
        %v475 = vshrl.u32 %v474, 7
        %v476 = vsub.s32 0, %v475
        %v477 = vrot.slane %v472, %v476
        %v479 = vpack.i.b16 %v456, %v456
        %v481 = vlaneseq
        %v482 = vshrl.u32 %v481, 7
        %v483 = vsub.s32 0, %v482
        %v484 = vrot.slane %v479, %v483
        %v485 = vadd.bf16 %v427, %v463
        %v486 = vadd.bf16 %v428, %v470
        %v487 = vadd.bf16 %v429, %v477
        %v488 = vadd.bf16 %v430, %v484
        %v489 = vmul.bf16 %v485, 1009007652
        %v490 = vmul.bf16 %v486, 1009007652
        %v491 = vmul.bf16 %v487, 1009007652
        %v492 = vmul.bf16 %v488, 1009007652
        %v493 = vmax.bf16 %v485, %v489
        %v494 = vmax.bf16 %v486, %v490
        %v495 = vmax.bf16 %v487, %v491
        %v496 = vmax.bf16 %v488, %v492
        %v497 = vld [vmem:[#allocation2] sm:$0xff]
        %v498 = vld [vmem:[#allocation2 + $0x8] sm:$0xff]
        %v499 = vld [vmem:[#allocation2 + $0x10] sm:$0xff]
        %v500 = vld [vmem:[#allocation2 + $0x18] sm:$0xff]
        %v501 = vld [vmem:[#allocation2 + $0x20] sm:$0xff]
        %v502 = vld [vmem:[#allocation2 + $0x28] sm:$0xff]
        %v503 = vld [vmem:[#allocation2 + $0x30] sm:$0xff]
        %v504 = vld [vmem:[#allocation2 + $0x38] sm:$0xff]
        %v505 = vld [vmem:[#allocation2 + $0x40] sm:$0xff]
        %v506 = vld [vmem:[#allocation2 + $0x48] sm:$0xff]
        %v507 = vld [vmem:[#allocation2 + $0x50] sm:$0xff]
        %v508 = vld [vmem:[#allocation2 + $0x58] sm:$0xff]
        %v509 = vld [vmem:[#allocation2 + $0x60] sm:$0xff]
        %v510 = vld [vmem:[#allocation2 + $0x68] sm:$0xff]
        %v511 = vld [vmem:[#allocation2 + $0x70] sm:$0xff]
        %v512 = vld [vmem:[#allocation2 + $0x78] sm:$0xff]
        %v513 = vld [vmem:[#allocation2 + $0x80] sm:$0xff]
        %v514 = vld [vmem:[#allocation2 + $0x88] sm:$0xff]
        %v515 = vld [vmem:[#allocation2 + $0x90] sm:$0xff]
        %v516 = vld [vmem:[#allocation2 + $0x98] sm:$0xff]
        %v517 = vld [vmem:[#allocation2 + $0xa0] sm:$0xff]
        %v518 = vld [vmem:[#allocation2 + $0xa8] sm:$0xff]
        %v519 = vld [vmem:[#allocation2 + $0xb0] sm:$0xff]
        %v520 = vld [vmem:[#allocation2 + $0xb8] sm:$0xff]
        %v521 = vld [vmem:[#allocation2 + $0xc0] sm:$0xff]
        %v522 = vld [vmem:[#allocation2 + $0xc8] sm:$0xff]
        %v523 = vld [vmem:[#allocation2 + $0xd0] sm:$0xff]
        %v524 = vld [vmem:[#allocation2 + $0xd8] sm:$0xff]
        %v525 = vld [vmem:[#allocation2 + $0xe0] sm:$0xff]
        %v526 = vld [vmem:[#allocation2 + $0xe8] sm:$0xff]
        %v527 = vld [vmem:[#allocation2 + $0xf0] sm:$0xff]
        %v528 = vld [vmem:[#allocation2 + $0xf8] sm:$0xff]
        %v529 = vld [vmem:[#allocation2 + $0x100] sm:$0xff]
        %v530 = vld [vmem:[#allocation2 + $0x108] sm:$0xff]
        %v531 = vld [vmem:[#allocation2 + $0x110] sm:$0xff]
        %v532 = vld [vmem:[#allocation2 + $0x118] sm:$0xff]
        %v533 = vld [vmem:[#allocation2 + $0x120] sm:$0xff]
        %v534 = vld [vmem:[#allocation2 + $0x128] sm:$0xff]
        %v535 = vld [vmem:[#allocation2 + $0x130] sm:$0xff]
        %v536 = vld [vmem:[#allocation2 + $0x138] sm:$0xff]
        %v537 = vld [vmem:[#allocation2 + $0x140] sm:$0xff]
        %v538 = vld [vmem:[#allocation2 + $0x148] sm:$0xff]
        %v539 = vld [vmem:[#allocation2 + $0x150] sm:$0xff]
        %v540 = vld [vmem:[#allocation2 + $0x158] sm:$0xff]
        %v541 = vld [vmem:[#allocation2 + $0x160] sm:$0xff]
        %v542 = vld [vmem:[#allocation2 + $0x168] sm:$0xff]
        %v543 = vld [vmem:[#allocation2 + $0x170] sm:$0xff]
        %v544 = vld [vmem:[#allocation2 + $0x178] sm:$0xff]
        %v545 = vld [vmem:[#allocation2 + $0x180] sm:$0xff]
        %v546 = vld [vmem:[#allocation2 + $0x188] sm:$0xff]
        %v547 = vld [vmem:[#allocation2 + $0x190] sm:$0xff]
        %v548 = vld [vmem:[#allocation2 + $0x198] sm:$0xff]
        %v549 = vld [vmem:[#allocation2 + $0x1a0] sm:$0xff]
        %v550 = vld [vmem:[#allocation2 + $0x1a8] sm:$0xff]
        %v551 = vld [vmem:[#allocation2 + $0x1b0] sm:$0xff]
        %v552 = vld [vmem:[#allocation2 + $0x1b8] sm:$0xff]
        %v553 = vld [vmem:[#allocation2 + $0x1c0] sm:$0xff]
        %v554 = vld [vmem:[#allocation2 + $0x1c8] sm:$0xff]
        %v555 = vld [vmem:[#allocation2 + $0x1d0] sm:$0xff]
        %v556 = vld [vmem:[#allocation2 + $0x1d8] sm:$0xff]
        %v557 = vld [vmem:[#allocation2 + $0x1e0] sm:$0xff]
        %v558 = vld [vmem:[#allocation2 + $0x1e8] sm:$0xff]
        %v559 = vld [vmem:[#allocation2 + $0x1f0] sm:$0xff]
        %v560 = vld [vmem:[#allocation2 + $0x1f8] sm:$0xff]
        %v561 = vld [vmem:[#allocation2 + $0x200] sm:$0xff]
        %v562 = vld [vmem:[#allocation2 + $0x208] sm:$0xff]
        %v563 = vld [vmem:[#allocation2 + $0x210] sm:$0xff]
        %v564 = vld [vmem:[#allocation2 + $0x218] sm:$0xff]
        %v565 = vld [vmem:[#allocation2 + $0x220] sm:$0xff]
        %v566 = vld [vmem:[#allocation2 + $0x228] sm:$0xff]
        %v567 = vld [vmem:[#allocation2 + $0x230] sm:$0xff]
        %v568 = vld [vmem:[#allocation2 + $0x238] sm:$0xff]
        %v569 = vld [vmem:[#allocation2 + $0x240] sm:$0xff]
        %v570 = vld [vmem:[#allocation2 + $0x248] sm:$0xff]
        %v571 = vld [vmem:[#allocation2 + $0x250] sm:$0xff]
        %v572 = vld [vmem:[#allocation2 + $0x258] sm:$0xff]
        %v573 = vld [vmem:[#allocation2 + $0x260] sm:$0xff]
        %v574 = vld [vmem:[#allocation2 + $0x268] sm:$0xff]
        %v575 = vld [vmem:[#allocation2 + $0x270] sm:$0xff]
        %v576 = vld [vmem:[#allocation2 + $0x278] sm:$0xff]
        %v577 = vld [vmem:[#allocation2 + $0x280] sm:$0xff]
        %v578 = vld [vmem:[#allocation2 + $0x288] sm:$0xff]
        %v579 = vld [vmem:[#allocation2 + $0x290] sm:$0xff]
        %v580 = vld [vmem:[#allocation2 + $0x298] sm:$0xff]
        %v581 = vld [vmem:[#allocation2 + $0x2a0] sm:$0xff]
        %v582 = vld [vmem:[#allocation2 + $0x2a8] sm:$0xff]
        %v583 = vld [vmem:[#allocation2 + $0x2b0] sm:$0xff]
        %v584 = vld [vmem:[#allocation2 + $0x2b8] sm:$0xff]
        %v585 = vld [vmem:[#allocation2 + $0x2c0] sm:$0xff]
        %v586 = vld [vmem:[#allocation2 + $0x2c8] sm:$0xff]
        %v587 = vld [vmem:[#allocation2 + $0x2d0] sm:$0xff]
        %v588 = vld [vmem:[#allocation2 + $0x2d8] sm:$0xff]
        %v589 = vld [vmem:[#allocation2 + $0x2e0] sm:$0xff]
        %v590 = vld [vmem:[#allocation2 + $0x2e8] sm:$0xff]
        %v591 = vld [vmem:[#allocation2 + $0x2f0] sm:$0xff]
        %v592 = vld [vmem:[#allocation2 + $0x2f8] sm:$0xff]
        %v593 = vld [vmem:[#allocation2 + $0x300] sm:$0xff]
        %v594 = vld [vmem:[#allocation2 + $0x308] sm:$0xff]
        %v595 = vld [vmem:[#allocation2 + $0x310] sm:$0xff]
        %v596 = vld [vmem:[#allocation2 + $0x318] sm:$0xff]
        %v697 = vunpack.c.l.b16 %v497
        %v698 = vunpack.c.h.b16 %v497
        %v699 = vunpack.c.l.b16 %v498
        %v700 = vunpack.c.h.b16 %v498
        %v701 = vunpack.c.l.b16 %v499
        %v702 = vunpack.c.h.b16 %v499
        %v703 = vunpack.c.l.b16 %v500
        %v704 = vunpack.c.h.b16 %v500
        %v705 = vunpack.c.l.b16 %v501
        %v706 = vunpack.c.h.b16 %v501
        %v707 = vunpack.c.l.b16 %v502
        %v708 = vunpack.c.h.b16 %v502
        %v709 = vunpack.c.l.b16 %v503
        %v710 = vunpack.c.h.b16 %v503
        %v711 = vunpack.c.l.b16 %v504
        %v712 = vunpack.c.h.b16 %v504
        %v713 = vunpack.c.l.b16 %v505
        %v714 = vunpack.c.h.b16 %v505
        %v715 = vunpack.c.l.b16 %v506
        %v716 = vunpack.c.h.b16 %v506
        %v717 = vunpack.c.l.b16 %v507
        %v718 = vunpack.c.h.b16 %v507
        %v719 = vunpack.c.l.b16 %v508
        %v720 = vunpack.c.h.b16 %v508
        %v721 = vunpack.c.l.b16 %v509
        %v722 = vunpack.c.h.b16 %v509
        %v723 = vunpack.c.l.b16 %v510
        %v724 = vunpack.c.h.b16 %v510
        %v725 = vunpack.c.l.b16 %v511
        %v726 = vunpack.c.h.b16 %v511
        %v727 = vunpack.c.l.b16 %v512
        %v728 = vunpack.c.h.b16 %v512
        %v729 = vunpack.c.l.b16 %v513
        %v730 = vunpack.c.h.b16 %v513
        %v731 = vunpack.c.l.b16 %v514
        %v732 = vunpack.c.h.b16 %v514
        %v733 = vunpack.c.l.b16 %v515
        %v734 = vunpack.c.h.b16 %v515
        %v735 = vunpack.c.l.b16 %v516
        %v736 = vunpack.c.h.b16 %v516
        %v737 = vunpack.c.l.b16 %v517
        %v738 = vunpack.c.h.b16 %v517
        %v739 = vunpack.c.l.b16 %v518
        %v740 = vunpack.c.h.b16 %v518
        %v741 = vunpack.c.l.b16 %v519
        %v742 = vunpack.c.h.b16 %v519
        %v743 = vunpack.c.l.b16 %v520
        %v744 = vunpack.c.h.b16 %v520
        %v745 = vunpack.c.l.b16 %v521
        %v746 = vunpack.c.h.b16 %v521
        %v747 = vunpack.c.l.b16 %v522
        %v748 = vunpack.c.h.b16 %v522
        %v749 = vunpack.c.l.b16 %v523
        %v750 = vunpack.c.h.b16 %v523
        %v751 = vunpack.c.l.b16 %v524
        %v752 = vunpack.c.h.b16 %v524
        %v753 = vunpack.c.l.b16 %v525
        %v754 = vunpack.c.h.b16 %v525
        %v755 = vunpack.c.l.b16 %v526
        %v756 = vunpack.c.h.b16 %v526
        %v757 = vunpack.c.l.b16 %v527
        %v758 = vunpack.c.h.b16 %v527
        %v759 = vunpack.c.l.b16 %v528
        %v760 = vunpack.c.h.b16 %v528
        %v761 = vunpack.c.l.b16 %v529
        %v762 = vunpack.c.h.b16 %v529
        %v763 = vunpack.c.l.b16 %v530
        %v764 = vunpack.c.h.b16 %v530
        %v765 = vunpack.c.l.b16 %v531
        %v766 = vunpack.c.h.b16 %v531
        %v767 = vunpack.c.l.b16 %v532
        %v768 = vunpack.c.h.b16 %v532
        %v769 = vunpack.c.l.b16 %v533
        %v770 = vunpack.c.h.b16 %v533
        %v771 = vunpack.c.l.b16 %v534
        %v772 = vunpack.c.h.b16 %v534
        %v773 = vunpack.c.l.b16 %v535
        %v774 = vunpack.c.h.b16 %v535
        %v775 = vunpack.c.l.b16 %v536
        %v776 = vunpack.c.h.b16 %v536
        %v777 = vunpack.c.l.b16 %v537
        %v778 = vunpack.c.h.b16 %v537
        %v779 = vunpack.c.l.b16 %v538
        %v780 = vunpack.c.h.b16 %v538
        %v781 = vunpack.c.l.b16 %v539
        %v782 = vunpack.c.h.b16 %v539
        %v783 = vunpack.c.l.b16 %v540
        %v784 = vunpack.c.h.b16 %v540
        %v785 = vunpack.c.l.b16 %v541
        %v786 = vunpack.c.h.b16 %v541
        %v787 = vunpack.c.l.b16 %v542
        %v788 = vunpack.c.h.b16 %v542
        %v789 = vunpack.c.l.b16 %v543
        %v790 = vunpack.c.h.b16 %v543
        %v791 = vunpack.c.l.b16 %v544
        %v792 = vunpack.c.h.b16 %v544
        %v793 = vunpack.c.l.b16 %v545
        %v794 = vunpack.c.h.b16 %v545
        %v795 = vunpack.c.l.b16 %v546
        %v796 = vunpack.c.h.b16 %v546
        %v797 = vunpack.c.l.b16 %v547
        %v798 = vunpack.c.h.b16 %v547
        %v799 = vunpack.c.l.b16 %v548
        %v800 = vunpack.c.h.b16 %v548
        %v801 = vunpack.c.l.b16 %v549
        %v802 = vunpack.c.h.b16 %v549
        %v803 = vunpack.c.l.b16 %v550
        %v804 = vunpack.c.h.b16 %v550
        %v805 = vunpack.c.l.b16 %v551
        %v806 = vunpack.c.h.b16 %v551
        %v807 = vunpack.c.l.b16 %v552
        %v808 = vunpack.c.h.b16 %v552
        %v809 = vunpack.c.l.b16 %v553
        %v810 = vunpack.c.h.b16 %v553
        %v811 = vunpack.c.l.b16 %v554
        %v812 = vunpack.c.h.b16 %v554
        %v813 = vunpack.c.l.b16 %v555
        %v814 = vunpack.c.h.b16 %v555
        %v815 = vunpack.c.l.b16 %v556
        %v816 = vunpack.c.h.b16 %v556
        %v817 = vunpack.c.l.b16 %v557
        %v818 = vunpack.c.h.b16 %v557
        %v819 = vunpack.c.l.b16 %v558
        %v820 = vunpack.c.h.b16 %v558
        %v821 = vunpack.c.l.b16 %v559
        %v822 = vunpack.c.h.b16 %v559
        %v823 = vunpack.c.l.b16 %v560
        %v824 = vunpack.c.h.b16 %v560
        %v825 = vunpack.c.l.b16 %v561
        %v826 = vunpack.c.h.b16 %v561
        %v827 = vunpack.c.l.b16 %v562
        %v828 = vunpack.c.h.b16 %v562
        %v829 = vunpack.c.l.b16 %v563
        %v830 = vunpack.c.h.b16 %v563
        %v831 = vunpack.c.l.b16 %v564
        %v832 = vunpack.c.h.b16 %v564
        %v833 = vunpack.c.l.b16 %v565
        %v834 = vunpack.c.h.b16 %v565
        %v835 = vunpack.c.l.b16 %v566
        %v836 = vunpack.c.h.b16 %v566
        %v837 = vunpack.c.l.b16 %v567
        %v838 = vunpack.c.h.b16 %v567
        %v839 = vunpack.c.l.b16 %v568
        %v840 = vunpack.c.h.b16 %v568
        %v841 = vunpack.c.l.b16 %v569
        %v842 = vunpack.c.h.b16 %v569
        %v843 = vunpack.c.l.b16 %v570
        %v844 = vunpack.c.h.b16 %v570
        %v845 = vunpack.c.l.b16 %v571
        %v846 = vunpack.c.h.b16 %v571
        %v847 = vunpack.c.l.b16 %v572
        %v848 = vunpack.c.h.b16 %v572
        %v849 = vunpack.c.l.b16 %v573
        %v850 = vunpack.c.h.b16 %v573
        %v851 = vunpack.c.l.b16 %v574
        %v852 = vunpack.c.h.b16 %v574
        %v853 = vunpack.c.l.b16 %v575
        %v854 = vunpack.c.h.b16 %v575
        %v855 = vunpack.c.l.b16 %v576
        %v856 = vunpack.c.h.b16 %v576
        %v857 = vunpack.c.l.b16 %v577
        %v858 = vunpack.c.h.b16 %v577
        %v859 = vunpack.c.l.b16 %v578
        %v860 = vunpack.c.h.b16 %v578
        %v861 = vunpack.c.l.b16 %v579
        %v862 = vunpack.c.h.b16 %v579
        %v863 = vunpack.c.l.b16 %v580
        %v864 = vunpack.c.h.b16 %v580
        %v865 = vunpack.c.l.b16 %v581
        %v866 = vunpack.c.h.b16 %v581
        %v867 = vunpack.c.l.b16 %v582
        %v868 = vunpack.c.h.b16 %v582
        %v869 = vunpack.c.l.b16 %v583
        %v870 = vunpack.c.h.b16 %v583
        %v871 = vunpack.c.l.b16 %v584
        %v872 = vunpack.c.h.b16 %v584
        %v873 = vunpack.c.l.b16 %v585
        %v874 = vunpack.c.h.b16 %v585
        %v875 = vunpack.c.l.b16 %v586
        %v876 = vunpack.c.h.b16 %v586
        %v877 = vunpack.c.l.b16 %v587
        %v878 = vunpack.c.h.b16 %v587
        %v879 = vunpack.c.l.b16 %v588
        %v880 = vunpack.c.h.b16 %v588
        %v881 = vunpack.c.l.b16 %v589
        %v882 = vunpack.c.h.b16 %v589
        %v883 = vunpack.c.l.b16 %v590
        %v884 = vunpack.c.h.b16 %v590
        %v885 = vunpack.c.l.b16 %v591
        %v886 = vunpack.c.h.b16 %v591
        %v887 = vunpack.c.l.b16 %v592
        %v888 = vunpack.c.h.b16 %v592
        %v889 = vunpack.c.l.b16 %v593
        %v890 = vunpack.c.h.b16 %v593
        %v891 = vunpack.c.l.b16 %v594
        %v892 = vunpack.c.h.b16 %v594
        %v893 = vunpack.c.l.b16 %v595
        %v894 = vunpack.c.h.b16 %v595
        %v895 = vunpack.c.l.b16 %v596
        %v896 = vunpack.c.h.b16 %v596
        %v897 = vpack.c.b16 %v701, %v697
        %v898 = vpack.c.b16 %v702, %v698
        %v899 = vpack.c.b16 %v703, %v699
        %v900 = vpack.c.b16 %v704, %v700
        %v901 = vpack.c.b16 %v709, %v705
        %v902 = vpack.c.b16 %v710, %v706
        %v903 = vpack.c.b16 %v711, %v707
        %v904 = vpack.c.b16 %v712, %v708
        %v905 = vpack.c.b16 %v717, %v713
        %v906 = vpack.c.b16 %v718, %v714
        %v907 = vpack.c.b16 %v719, %v715
        %v908 = vpack.c.b16 %v720, %v716
        %v909 = vpack.c.b16 %v725, %v721
        %v910 = vpack.c.b16 %v726, %v722
        %v911 = vpack.c.b16 %v727, %v723
        %v912 = vpack.c.b16 %v728, %v724
        %v913 = vpack.c.b16 %v733, %v729
        %v914 = vpack.c.b16 %v734, %v730
        %v915 = vpack.c.b16 %v735, %v731
        %v916 = vpack.c.b16 %v736, %v732
        %v917 = vpack.c.b16 %v741, %v737
        %v918 = vpack.c.b16 %v742, %v738
        %v919 = vpack.c.b16 %v743, %v739
        %v920 = vpack.c.b16 %v744, %v740
        %v921 = vpack.c.b16 %v749, %v745
        %v922 = vpack.c.b16 %v750, %v746
        %v923 = vpack.c.b16 %v751, %v747
        %v924 = vpack.c.b16 %v752, %v748
        %v925 = vpack.c.b16 %v757, %v753
        %v926 = vpack.c.b16 %v758, %v754
        %v927 = vpack.c.b16 %v759, %v755
        %v928 = vpack.c.b16 %v760, %v756
        %v929 = vpack.c.b16 %v765, %v761
        %v930 = vpack.c.b16 %v766, %v762
        %v931 = vpack.c.b16 %v767, %v763
        %v932 = vpack.c.b16 %v768, %v764
        %v933 = vpack.c.b16 %v773, %v769
        %v934 = vpack.c.b16 %v774, %v770
        %v935 = vpack.c.b16 %v775, %v771
        %v936 = vpack.c.b16 %v776, %v772
        %v937 = vpack.c.b16 %v781, %v777
        %v938 = vpack.c.b16 %v782, %v778
        %v939 = vpack.c.b16 %v783, %v779
        %v940 = vpack.c.b16 %v784, %v780
        %v941 = vpack.c.b16 %v789, %v785
        %v942 = vpack.c.b16 %v790, %v786
        %v943 = vpack.c.b16 %v791, %v787
        %v944 = vpack.c.b16 %v792, %v788
        %v945 = vpack.c.b16 %v797, %v793
        %v946 = vpack.c.b16 %v798, %v794
        %v947 = vpack.c.b16 %v799, %v795
        %v948 = vpack.c.b16 %v800, %v796
        %v949 = vpack.c.b16 %v805, %v801
        %v950 = vpack.c.b16 %v806, %v802
        %v951 = vpack.c.b16 %v807, %v803
        %v952 = vpack.c.b16 %v808, %v804
        %v953 = vpack.c.b16 %v813, %v809
        %v954 = vpack.c.b16 %v814, %v810
        %v955 = vpack.c.b16 %v815, %v811
        %v956 = vpack.c.b16 %v816, %v812
        %v957 = vpack.c.b16 %v821, %v817
        %v958 = vpack.c.b16 %v822, %v818
        %v959 = vpack.c.b16 %v823, %v819
        %v960 = vpack.c.b16 %v824, %v820
        %v961 = vpack.c.b16 %v829, %v825
        %v962 = vpack.c.b16 %v830, %v826
        %v963 = vpack.c.b16 %v831, %v827
        %v964 = vpack.c.b16 %v832, %v828
        %v965 = vpack.c.b16 %v837, %v833
        %v966 = vpack.c.b16 %v838, %v834
        %v967 = vpack.c.b16 %v839, %v835
        %v968 = vpack.c.b16 %v840, %v836
        %v969 = vpack.c.b16 %v845, %v841
        %v970 = vpack.c.b16 %v846, %v842
        %v971 = vpack.c.b16 %v847, %v843
        %v972 = vpack.c.b16 %v848, %v844
        %v973 = vpack.c.b16 %v853, %v849
        %v974 = vpack.c.b16 %v854, %v850
        %v975 = vpack.c.b16 %v855, %v851
        %v976 = vpack.c.b16 %v856, %v852
        %v977 = vpack.c.b16 %v861, %v857
        %v978 = vpack.c.b16 %v862, %v858
        %v979 = vpack.c.b16 %v863, %v859
        %v980 = vpack.c.b16 %v864, %v860
        %v981 = vpack.c.b16 %v869, %v865
        %v982 = vpack.c.b16 %v870, %v866
        %v983 = vpack.c.b16 %v871, %v867
        %v984 = vpack.c.b16 %v872, %v868
        %v985 = vpack.c.b16 %v877, %v873
        %v986 = vpack.c.b16 %v878, %v874
        %v987 = vpack.c.b16 %v879, %v875
        %v988 = vpack.c.b16 %v880, %v876
        %v989 = vpack.c.b16 %v885, %v881
        %v990 = vpack.c.b16 %v886, %v882
        %v991 = vpack.c.b16 %v887, %v883
        %v992 = vpack.c.b16 %v888, %v884
        %v993 = vpack.c.b16 %v893, %v889
        %v994 = vpack.c.b16 %v894, %v890
        %v995 = vpack.c.b16 %v895, %v891
        %v996 = vpack.c.b16 %v896, %v892
        %vm1097 = vcmask 130048
        %v1099 = vsel %vm1097, %v496, 0
        %1101 = vmatprep.subr.bf16.mxu0 %v926
        %1102 = vmatpush1.bf16.msra.mxu0 %v925
        %1103 = vmatprep.subr.bf16.mxu0 %v922
        %1104 = vmatpush1.bf16.msra.mxu0 %v921
        %1105 = vmatprep.subr.bf16.mxu0 %v918
        %1106 = vmatpush1.bf16.msra.mxu0 %v917
        %1107 = vmatprep.subr.bf16.mxu0 %v914
        %1108 = vmatpush1.bf16.msra.mxu0 %v913
        %1109 = vmatprep.subr.bf16.mxu0 %v910
        %1110 = vmatpush1.bf16.msra.mxu0 %v909
        %1111 = vmatprep.subr.bf16.mxu0 %v906
        %1112 = vmatpush1.bf16.msra.mxu0 %v905
        %1113 = vmatprep.subr.bf16.mxu0 %v902
        %1114 = vmatpush1.bf16.msra.mxu0 %v901
        %1115 = vmatprep.subr.bf16.mxu0 %v898
        %1116 = vmatpush1.bf16.msra.mxu0 %v897
        %1117 = vmatprep.subr.bf16.mxu0 %v958
        %1118 = vmatpush2.bf16.msra.mxu0 %v957
        %1119 = vmatprep.subr.bf16.mxu0 %v954
        %1120 = vmatpush2.bf16.msra.mxu0 %v953
        %1121 = vmatprep.subr.bf16.mxu0 %v950
        %1122 = vmatpush2.bf16.msra.mxu0 %v949
        %1123 = vmatprep.subr.bf16.mxu0 %v946
        %1124 = vmatpush2.bf16.msra.mxu0 %v945
        %1125 = vmatprep.subr.bf16.mxu0 %v942
        %1126 = vmatpush2.bf16.msra.mxu0 %v941
        %1127 = vmatprep.subr.bf16.mxu0 %v938
        %1128 = vmatpush2.bf16.msra.mxu0 %v937
        %1129 = vmatprep.subr.bf16.mxu0 %v934
        %1130 = vmatpush2.bf16.msra.mxu0 %v933
        %1131 = vmatprep.subr.bf16.mxu0 %v930
        %1132 = vmatpush2.bf16.msra.mxu0 %v929
        %1133 = vmatprep.mubr.bf16.mxu0 %v494
        %1134 = vmatmul.mubr.bf16.gmra.mxu0 %v493
        %v1135 = vpop.f32.mrf.mxu0
        %v1136 = vadd.f32 0.0, %v1135
        %v1137 = vpop.f32.mrf.mxu0
        %v1138 = vadd.f32 0.0, %v1137
        %v1139 = vpop.f32.mrf.mxu0
        %v1140 = vpop.f32.mrf.mxu0
        %1141 = vdwg.mxu0
        %1142 = vmatprep.subr.bf16.mxu0 %v990
        %1143 = vmatpush1.bf16.msra.mxu0 %v989
        %1144 = vmatprep.subr.bf16.mxu0 %v986
        %1145 = vmatpush1.bf16.msra.mxu0 %v985
        %1146 = vmatprep.subr.bf16.mxu0 %v982
        %1147 = vmatpush1.bf16.msra.mxu0 %v981
        %1148 = vmatprep.subr.bf16.mxu0 %v978
        %1149 = vmatpush1.bf16.msra.mxu0 %v977
        %1150 = vmatprep.subr.bf16.mxu0 %v974
        %1151 = vmatpush1.bf16.msra.mxu0 %v973
        %1152 = vmatprep.subr.bf16.mxu0 %v970
        %1153 = vmatpush1.bf16.msra.mxu0 %v969
        %1154 = vmatprep.subr.bf16.mxu0 %v966
        %1155 = vmatpush1.bf16.msra.mxu0 %v965
        %1156 = vmatprep.subr.bf16.mxu0 %v962
        %1157 = vmatpush1.bf16.msra.mxu0 %v961
        %1158 = vmatprep.subr.bf16.mxu0 0
        %1159 = vmatpush2.bf16.msra.mxu0 0
        %1160 = vmatprep.subr.bf16.mxu0 0
        %1161 = vmatpush2.bf16.msra.mxu0 0
        %1162 = vmatprep.subr.bf16.mxu0 0
        %1163 = vmatpush2.bf16.msra.mxu0 0
        %1164 = vmatprep.subr.bf16.mxu0 0
        %1165 = vmatpush2.bf16.msra.mxu0 0
        %1166 = vmatprep.subr.bf16.mxu0 0
        %1167 = vmatpush2.bf16.msra.mxu0 0
        %1168 = vmatprep.subr.bf16.mxu0 0
        %1169 = vmatpush2.bf16.msra.mxu0 0
        %1170 = vmatprep.subr.bf16.mxu0 0
        %1171 = vmatpush2.bf16.msra.mxu0 0
        %1172 = vmatprep.subr.bf16.mxu0 %v994
        %1173 = vmatpush2.bf16.msra.mxu0 %v993
        %1174 = vmatprep.mubr.bf16.mxu0 %v1099
        %1175 = vmatmul.mubr.bf16.gmra.mxu0 %v495
        %v1176 = vpop.f32.mrf.mxu0
        %v1177 = vadd.f32 %v1136, %v1176
        %v1178 = vpop.f32.mrf.mxu0
        %v1179 = vadd.f32 %v1138, %v1178
        %v1180 = vpop.f32.mrf.mxu0
        %v1181 = vpop.f32.mrf.mxu0
        %1182 = vdwg.mxu0
        %1183 = vmatprep.subr.bf16.mxu0 %v928
        %1184 = vmatpush1.bf16.msra.mxu0 %v927
        %1185 = vmatprep.subr.bf16.mxu0 %v924
        %1186 = vmatpush1.bf16.msra.mxu0 %v923
        %1187 = vmatprep.subr.bf16.mxu0 %v920
        %1188 = vmatpush1.bf16.msra.mxu0 %v919
        %1189 = vmatprep.subr.bf16.mxu0 %v916
        %1190 = vmatpush1.bf16.msra.mxu0 %v915
        %1191 = vmatprep.subr.bf16.mxu0 %v912
        %1192 = vmatpush1.bf16.msra.mxu0 %v911
        %1193 = vmatprep.subr.bf16.mxu0 %v908
        %1194 = vmatpush1.bf16.msra.mxu0 %v907
        %1195 = vmatprep.subr.bf16.mxu0 %v904
        %1196 = vmatpush1.bf16.msra.mxu0 %v903
        %1197 = vmatprep.subr.bf16.mxu0 %v900
        %1198 = vmatpush1.bf16.msra.mxu0 %v899
        %1199 = vmatprep.subr.bf16.mxu0 %v960
        %1200 = vmatpush2.bf16.msra.mxu0 %v959
        %1201 = vmatprep.subr.bf16.mxu0 %v956
        %1202 = vmatpush2.bf16.msra.mxu0 %v955
        %1203 = vmatprep.subr.bf16.mxu0 %v952
        %1204 = vmatpush2.bf16.msra.mxu0 %v951
        %1205 = vmatprep.subr.bf16.mxu0 %v948
        %1206 = vmatpush2.bf16.msra.mxu0 %v947
        %1207 = vmatprep.subr.bf16.mxu0 %v944
        %1208 = vmatpush2.bf16.msra.mxu0 %v943
        %1209 = vmatprep.subr.bf16.mxu0 %v940
        %1210 = vmatpush2.bf16.msra.mxu0 %v939
        %1211 = vmatprep.subr.bf16.mxu0 %v936
        %1212 = vmatpush2.bf16.msra.mxu0 %v935
        %1213 = vmatprep.subr.bf16.mxu0 %v932
        %1214 = vmatpush2.bf16.msra.mxu0 %v931
        %1215 = vmatprep.mubr.bf16.mxu0 %v494
        %1216 = vmatmul.mubr.bf16.gmra.mxu0 %v493
        %v1217 = vpop.f32.mrf.mxu0
        %v1218 = vadd.f32 0.0, %v1217
        %v1219 = vpop.f32.mrf.mxu0
        %v1220 = vadd.f32 0.0, %v1219
        %v1221 = vpop.f32.mrf.mxu0
        %v1222 = vpop.f32.mrf.mxu0
        %1223 = vdwg.mxu0
        %1224 = vmatprep.subr.bf16.mxu0 %v992
        %1225 = vmatpush1.bf16.msra.mxu0 %v991
        %1226 = vmatprep.subr.bf16.mxu0 %v988
        %1227 = vmatpush1.bf16.msra.mxu0 %v987
        %1228 = vmatprep.subr.bf16.mxu0 %v984
        %1229 = vmatpush1.bf16.msra.mxu0 %v983
        %1230 = vmatprep.subr.bf16.mxu0 %v980
        %1231 = vmatpush1.bf16.msra.mxu0 %v979
        %1232 = vmatprep.subr.bf16.mxu0 %v976
        %1233 = vmatpush1.bf16.msra.mxu0 %v975
        %1234 = vmatprep.subr.bf16.mxu0 %v972
        %1235 = vmatpush1.bf16.msra.mxu0 %v971
        %1236 = vmatprep.subr.bf16.mxu0 %v968
        %1237 = vmatpush1.bf16.msra.mxu0 %v967
        %1238 = vmatprep.subr.bf16.mxu0 %v964
        %1239 = vmatpush1.bf16.msra.mxu0 %v963
        %1240 = vmatprep.subr.bf16.mxu0 0
        %1241 = vmatpush2.bf16.msra.mxu0 0
        %1242 = vmatprep.subr.bf16.mxu0 0
        %1243 = vmatpush2.bf16.msra.mxu0 0
        %1244 = vmatprep.subr.bf16.mxu0 0
        %1245 = vmatpush2.bf16.msra.mxu0 0
        %1246 = vmatprep.subr.bf16.mxu0 0
        %1247 = vmatpush2.bf16.msra.mxu0 0
        %1248 = vmatprep.subr.bf16.mxu0 0
        %1249 = vmatpush2.bf16.msra.mxu0 0
        %1250 = vmatprep.subr.bf16.mxu0 0
        %1251 = vmatpush2.bf16.msra.mxu0 0
        %1252 = vmatprep.subr.bf16.mxu0 0
        %1253 = vmatpush2.bf16.msra.mxu0 0
        %1254 = vmatprep.subr.bf16.mxu0 %v996
        %1255 = vmatpush2.bf16.msra.mxu0 %v995
        %1256 = vmatprep.mubr.bf16.mxu0 %v1099
        %1257 = vmatmul.mubr.bf16.gmra.mxu0 %v495
        %v1258 = vpop.f32.mrf.mxu0
        %v1259 = vadd.f32 %v1218, %v1258
        %v1260 = vpop.f32.mrf.mxu0
        %v1261 = vadd.f32 %v1220, %v1260
        %v1262 = vpop.f32.mrf.mxu0
        %v1263 = vpop.f32.mrf.mxu0
        %1264 = vdwg.mxu0
        %v1265 = vpack.c.bf16 %v1177, %v1177
        %v1266 = vpack.c.bf16 %v1179, %v1179
        %v1267 = vpack.c.bf16 %v1259, %v1259
        %v1268 = vpack.c.bf16 %v1261, %v1261
        %v1269 = vld [vmem:[%s4] sm:$0xf]
        %v1272 = vunpack.c.l.s4 1966171168
        %v1273 = vunpack.c.0.s8 %v1272
        %v1274 = vlaneseq
        %v1275 = vshrl.u32 %v1274, 7
        %v1276 = vsub.s32 %v1273, %v1275
        %v1277 = vrot.slane %v1269, %v1276
        %v1278 = vcombine.high %v1277, %v1277
        %v1280 = vunpack.c.l.s4 1966171168
        %v1281 = vunpack.c.0.s8 %v1280
        %v1282 = vlaneseq
        %v1283 = vshrl.u32 %v1282, 7
        %v1284 = vsub.s32 %v1281, %v1283
        %v1285 = vrot.slane %v1277, %v1284
        %v1287 = vunpack.c.l.s4 1966171168
        %v1288 = vunpack.c.0.s8 %v1287
        %v1289 = vlaneseq
        %v1290 = vshrl.u32 %v1289, 7
        %v1291 = vsub.s32 %v1288, %v1290
        %v1292 = vrot.slane %v1278, %v1291
        %v1293 = vcombine.high %v1285, %v1285
        %v1294 = vcombine.high %v1292, %v1292
        %v1296 = vpack.i.b16 %v1285, %v1285
        %v1298 = vlaneseq
        %v1299 = vshrl.u32 %v1298, 7
        %v1300 = vsub.s32 0, %v1299
        %v1301 = vrot.slane %v1296, %v1300
        %v1303 = vpack.i.b16 %v1292, %v1292
        %v1305 = vlaneseq
        %v1306 = vshrl.u32 %v1305, 7
        %v1307 = vsub.s32 0, %v1306
        %v1308 = vrot.slane %v1303, %v1307
        %v1310 = vpack.i.b16 %v1293, %v1293
        %v1312 = vlaneseq
        %v1313 = vshrl.u32 %v1312, 7
        %v1314 = vsub.s32 0, %v1313
        %v1315 = vrot.slane %v1310, %v1314
        %v1317 = vpack.i.b16 %v1294, %v1294
        %v1319 = vlaneseq
        %v1320 = vshrl.u32 %v1319, 7
        %v1321 = vsub.s32 0, %v1320
        %v1322 = vrot.slane %v1317, %v1321
        %v1323 = vadd.bf16 %v1265, %v1301
        %v1324 = vadd.bf16 %v1266, %v1308
        %v1325 = vadd.bf16 %v1267, %v1315
        %v1326 = vadd.bf16 %v1268, %v1322
        %v1327 = vmul.bf16 %v1323, 1009007652
        %v1328 = vmul.bf16 %v1324, 1009007652
        %v1329 = vmul.bf16 %v1325, 1009007652
        %v1330 = vmul.bf16 %v1326, 1009007652
        %v1331 = vmax.bf16 %v1323, %v1327
        %v1332 = vmax.bf16 %v1324, %v1328
        %v1333 = vmax.bf16 %v1325, %v1329
        %v1334 = vmax.bf16 %v1326, %v1330
        %v1335 = vld [vmem:[%s5] sm:$0xf]
        %v1336 = vld [vmem:[%s5 + $0x4] sm:$0xf]
        %v1337 = vld [vmem:[%s5 + $0x8] sm:$0xf]
        %v1338 = vld [vmem:[%s5 + $0xc] sm:$0xf]
        %v1339 = vld [vmem:[%s5 + $0x10] sm:$0xf]
        %v1340 = vld [vmem:[%s5 + $0x14] sm:$0xf]
        %v1341 = vld [vmem:[%s5 + $0x18] sm:$0xf]
        %v1342 = vld [vmem:[%s5 + $0x1c] sm:$0xf]
        %v1343 = vld [vmem:[%s5 + $0x20] sm:$0xf]
        %v1344 = vld [vmem:[%s5 + $0x24] sm:$0xf]
        %v1345 = vld [vmem:[%s5 + $0x28] sm:$0xf]
        %v1346 = vld [vmem:[%s5 + $0x2c] sm:$0xf]
        %v1347 = vld [vmem:[%s5 + $0x30] sm:$0xf]
        %v1348 = vld [vmem:[%s5 + $0x34] sm:$0xf]
        %v1349 = vld [vmem:[%s5 + $0x38] sm:$0xf]
        %v1350 = vld [vmem:[%s5 + $0x3c] sm:$0xf]
        %v1351 = vld [vmem:[%s5 + $0x40] sm:$0xf]
        %v1352 = vld [vmem:[%s5 + $0x44] sm:$0xf]
        %v1353 = vld [vmem:[%s5 + $0x48] sm:$0xf]
        %v1354 = vld [vmem:[%s5 + $0x4c] sm:$0xf]
        %v1355 = vld [vmem:[%s5 + $0x50] sm:$0xf]
        %v1356 = vld [vmem:[%s5 + $0x54] sm:$0xf]
        %v1357 = vld [vmem:[%s5 + $0x58] sm:$0xf]
        %v1358 = vld [vmem:[%s5 + $0x5c] sm:$0xf]
        %v1359 = vld [vmem:[%s5 + $0x60] sm:$0xf]
        %v1360 = vld [vmem:[%s5 + $0x64] sm:$0xf]
        %v1361 = vld [vmem:[%s5 + $0x68] sm:$0xf]
        %v1362 = vld [vmem:[%s5 + $0x6c] sm:$0xf]
        %v1363 = vld [vmem:[%s5 + $0x70] sm:$0xf]
        %v1364 = vld [vmem:[%s5 + $0x74] sm:$0xf]
        %v1365 = vld [vmem:[%s5 + $0x78] sm:$0xf]
        %v1366 = vld [vmem:[%s5 + $0x7c] sm:$0xf]
        %v1367 = vld [vmem:[%s5 + $0x80] sm:$0xf]
        %v1368 = vld [vmem:[%s5 + $0x84] sm:$0xf]
        %v1369 = vld [vmem:[%s5 + $0x88] sm:$0xf]
        %v1370 = vld [vmem:[%s5 + $0x8c] sm:$0xf]
        %v1371 = vld [vmem:[%s5 + $0x90] sm:$0xf]
        %v1372 = vld [vmem:[%s5 + $0x94] sm:$0xf]
        %v1373 = vld [vmem:[%s5 + $0x98] sm:$0xf]
        %v1374 = vld [vmem:[%s5 + $0x9c] sm:$0xf]
        %v1375 = vld [vmem:[%s5 + $0xa0] sm:$0xf]
        %v1376 = vld [vmem:[%s5 + $0xa4] sm:$0xf]
        %v1377 = vld [vmem:[%s5 + $0xa8] sm:$0xf]
        %v1378 = vld [vmem:[%s5 + $0xac] sm:$0xf]
        %v1379 = vld [vmem:[%s5 + $0xb0] sm:$0xf]
        %v1380 = vld [vmem:[%s5 + $0xb4] sm:$0xf]
        %v1381 = vld [vmem:[%s5 + $0xb8] sm:$0xf]
        %v1382 = vld [vmem:[%s5 + $0xbc] sm:$0xf]
        %v1383 = vld [vmem:[%s5 + $0xc0] sm:$0xf]
        %v1384 = vld [vmem:[%s5 + $0xc4] sm:$0xf]
        %v1385 = vld [vmem:[%s6] sm:$0x1]
        %v1387 = vlaneseq
        %v1388 = vshrl.u32 %v1387, 7
        %v1389 = vsub.s32 0, %v1388
        %v1390 = vrot.slane %v1385, %v1389
        %v1442 = vunpack.c.l.b16 %v1335
        %v1443 = vunpack.c.l.b16 %v1336
        %v1444 = vunpack.c.l.b16 %v1337
        %v1445 = vunpack.c.l.b16 %v1338
        %v1446 = vunpack.c.l.b16 %v1339
        %v1447 = vunpack.c.l.b16 %v1340
        %v1448 = vunpack.c.l.b16 %v1341
        %v1449 = vunpack.c.l.b16 %v1342
        %v1450 = vunpack.c.l.b16 %v1343
        %v1451 = vunpack.c.l.b16 %v1344
        %v1452 = vunpack.c.l.b16 %v1345
        %v1453 = vunpack.c.l.b16 %v1346
        %v1454 = vunpack.c.l.b16 %v1347
        %v1455 = vunpack.c.l.b16 %v1348
        %v1456 = vunpack.c.l.b16 %v1349
        %v1457 = vunpack.c.l.b16 %v1350
        %v1458 = vunpack.c.l.b16 %v1351
        %v1459 = vunpack.c.l.b16 %v1352
        %v1460 = vunpack.c.l.b16 %v1353
        %v1461 = vunpack.c.l.b16 %v1354
        %v1462 = vunpack.c.l.b16 %v1355
        %v1463 = vunpack.c.l.b16 %v1356
        %v1464 = vunpack.c.l.b16 %v1357
        %v1465 = vunpack.c.l.b16 %v1358
        %v1466 = vunpack.c.l.b16 %v1359
        %v1467 = vunpack.c.l.b16 %v1360
        %v1468 = vunpack.c.l.b16 %v1361
        %v1469 = vunpack.c.l.b16 %v1362
        %v1470 = vunpack.c.l.b16 %v1363
        %v1471 = vunpack.c.l.b16 %v1364
        %v1472 = vunpack.c.l.b16 %v1365
        %v1473 = vunpack.c.l.b16 %v1366
        %v1474 = vunpack.c.l.b16 %v1367
        %v1475 = vunpack.c.l.b16 %v1368
        %v1476 = vunpack.c.l.b16 %v1369
        %v1477 = vunpack.c.l.b16 %v1370
        %v1478 = vunpack.c.l.b16 %v1371
        %v1479 = vunpack.c.l.b16 %v1372
        %v1480 = vunpack.c.l.b16 %v1373
        %v1481 = vunpack.c.l.b16 %v1374
        %v1482 = vunpack.c.l.b16 %v1375
        %v1483 = vunpack.c.l.b16 %v1376
        %v1484 = vunpack.c.l.b16 %v1377
        %v1485 = vunpack.c.l.b16 %v1378
        %v1486 = vunpack.c.l.b16 %v1379
        %v1487 = vunpack.c.l.b16 %v1380
        %v1488 = vunpack.c.l.b16 %v1381
        %v1489 = vunpack.c.l.b16 %v1382
        %v1490 = vunpack.c.l.b16 %v1383
        %v1491 = vunpack.c.l.b16 %v1384
        %v1492 = vpack.c.b16 %v1443, %v1442
        %v1493 = vpack.c.b16 %v1445, %v1444
        %v1494 = vpack.c.b16 %v1447, %v1446
        %v1495 = vpack.c.b16 %v1449, %v1448
        %v1496 = vpack.c.b16 %v1451, %v1450
        %v1497 = vpack.c.b16 %v1453, %v1452
        %v1498 = vpack.c.b16 %v1455, %v1454
        %v1499 = vpack.c.b16 %v1457, %v1456
        %v1500 = vpack.c.b16 %v1459, %v1458
        %v1501 = vpack.c.b16 %v1461, %v1460
        %v1502 = vpack.c.b16 %v1463, %v1462
        %v1503 = vpack.c.b16 %v1465, %v1464
        %v1504 = vpack.c.b16 %v1467, %v1466
        %v1505 = vpack.c.b16 %v1469, %v1468
        %v1506 = vpack.c.b16 %v1471, %v1470
        %v1507 = vpack.c.b16 %v1473, %v1472
        %v1508 = vpack.c.b16 %v1475, %v1474
        %v1509 = vpack.c.b16 %v1477, %v1476
        %v1510 = vpack.c.b16 %v1479, %v1478
        %v1511 = vpack.c.b16 %v1481, %v1480
        %v1512 = vpack.c.b16 %v1483, %v1482
        %v1513 = vpack.c.b16 %v1485, %v1484
        %v1514 = vpack.c.b16 %v1487, %v1486
        %v1515 = vpack.c.b16 %v1489, %v1488
        %v1516 = vpack.c.b16 %v1491, %v1490
        %v1543 = vsel %vm1097, %v1334, 0
        %1545 = vmatprep.subr.bf16.mxu0 0
        %1546 = vmatpush1.bf16.msra.mxu0 %v1499
        %1547 = vmatprep.subr.bf16.mxu0 0
        %1548 = vmatpush1.bf16.msra.mxu0 %v1498
        %1549 = vmatprep.subr.bf16.mxu0 0
        %1550 = vmatpush1.bf16.msra.mxu0 %v1497
        %1551 = vmatprep.subr.bf16.mxu0 0
        %1552 = vmatpush1.bf16.msra.mxu0 %v1496
        %1553 = vmatprep.subr.bf16.mxu0 0
        %1554 = vmatpush1.bf16.msra.mxu0 %v1495
        %1555 = vmatprep.subr.bf16.mxu0 0
        %1556 = vmatpush1.bf16.msra.mxu0 %v1494
        %1557 = vmatprep.subr.bf16.mxu0 0
        %1558 = vmatpush1.bf16.msra.mxu0 %v1493
        %1559 = vmatprep.subr.bf16.mxu0 0
        %1560 = vmatpush1.bf16.msra.mxu0 %v1492
        %1561 = vmatprep.subr.bf16.mxu0 0
        %1562 = vmatpush2.bf16.msra.mxu0 %v1507
        %1563 = vmatprep.subr.bf16.mxu0 0
        %1564 = vmatpush2.bf16.msra.mxu0 %v1506
        %1565 = vmatprep.subr.bf16.mxu0 0
        %1566 = vmatpush2.bf16.msra.mxu0 %v1505
        %1567 = vmatprep.subr.bf16.mxu0 0
        %1568 = vmatpush2.bf16.msra.mxu0 %v1504
        %1569 = vmatprep.subr.bf16.mxu0 0
        %1570 = vmatpush2.bf16.msra.mxu0 %v1503
        %1571 = vmatprep.subr.bf16.mxu0 0
        %1572 = vmatpush2.bf16.msra.mxu0 %v1502
        %1573 = vmatprep.subr.bf16.mxu0 0
        %1574 = vmatpush2.bf16.msra.mxu0 %v1501
        %1575 = vmatprep.subr.bf16.mxu0 0
        %1576 = vmatpush2.bf16.msra.mxu0 %v1500
        %1577 = vmatprep.mubr.bf16.mxu0 %v1332
        %1578 = vmatmul.mubr.bf16.gmra.mxu0 %v1331
        %v1579 = vpop.f32.mrf.mxu0
        %v1580 = vadd.f32 %v1390, %v1579
        %v1581 = vpop.f32.mrf.mxu0
        %v1582 = vpop.f32.mrf.mxu0
        %v1583 = vpop.f32.mrf.mxu0
        %1584 = vdwg.mxu0
        %1585 = vmatprep.subr.bf16.mxu0 0
        %1586 = vmatpush1.bf16.msra.mxu0 %v1515
        %1587 = vmatprep.subr.bf16.mxu0 0
        %1588 = vmatpush1.bf16.msra.mxu0 %v1514
        %1589 = vmatprep.subr.bf16.mxu0 0
        %1590 = vmatpush1.bf16.msra.mxu0 %v1513
        %1591 = vmatprep.subr.bf16.mxu0 0
        %1592 = vmatpush1.bf16.msra.mxu0 %v1512
        %1593 = vmatprep.subr.bf16.mxu0 0
        %1594 = vmatpush1.bf16.msra.mxu0 %v1511
        %1595 = vmatprep.subr.bf16.mxu0 0
        %1596 = vmatpush1.bf16.msra.mxu0 %v1510
        %1597 = vmatprep.subr.bf16.mxu0 0
        %1598 = vmatpush1.bf16.msra.mxu0 %v1509
        %1599 = vmatprep.subr.bf16.mxu0 0
        %1600 = vmatpush1.bf16.msra.mxu0 %v1508
        %1601 = vmatprep.subr.bf16.mxu0 0
        %1602 = vmatpush2.bf16.msra.mxu0 0
        %1603 = vmatprep.subr.bf16.mxu0 0
        %1604 = vmatpush2.bf16.msra.mxu0 0
        %1605 = vmatprep.subr.bf16.mxu0 0
        %1606 = vmatpush2.bf16.msra.mxu0 0
        %1607 = vmatprep.subr.bf16.mxu0 0
        %1608 = vmatpush2.bf16.msra.mxu0 0
        %1609 = vmatprep.subr.bf16.mxu0 0
        %1610 = vmatpush2.bf16.msra.mxu0 0
        %1611 = vmatprep.subr.bf16.mxu0 0
        %1612 = vmatpush2.bf16.msra.mxu0 0
        %1613 = vmatprep.subr.bf16.mxu0 0
        %1614 = vmatpush2.bf16.msra.mxu0 0
        %1615 = vmatprep.subr.bf16.mxu0 0
        %1616 = vmatpush2.bf16.msra.mxu0 %v1516
        %1617 = vmatprep.mubr.bf16.mxu0 %v1543
        %1618 = vmatmul.mubr.bf16.gmra.mxu0 %v1333
        %v1619 = vpop.f32.mrf.mxu0
        %v1620 = vadd.f32 %v1580, %v1619
        %v1621 = vpop.f32.mrf.mxu0
        %v1622 = vpop.f32.mrf.mxu0
        %v1623 = vpop.f32.mrf.mxu0
        %1624 = vdwg.mxu0
        %v1625 = vtanh.pop %v1620
        %vm1626 = vcmask 64512
        %1627 = vst.msk [vmem:[%s288] sm:$0xff] %vm1626, %v1625
        %p1628 = scmp.lt.s32.totalorder %s19, 1
        %s1629 = scalar_select %p1628, %s19, 1
        %s1630 = smul.addr %s1629, 8
        %s1631 = scalar_lea.vmem %s7, %s1630
        // Predicated region
        $region53: #{tpu_custom_call.1} parent=47 // pred_check
          %p1632 = pneg %p189
        $region54: #{tpu_custom_call.1} parent=47 // pred_check_branch
          %1634 = sbr.rel (%p1632) target = $region56
        $region55: #{tpu_custom_call.1} parent=47 // pred_region
          _
        $region56: #{tpu_custom_call.1} parent=47 // pred_fallthru
          _
      $region48: #{tpu_custom_call.1} parent=5 // pred_fallthru
        _
      %p1635 = scmp.le.s32.totalorder 2, %s14
      // Predicated region
      $region57: #{tpu_custom_call.1} parent=5 // pred_check
        %p1636 = pneg %p1635
      $region58: #{tpu_custom_call.1} parent=5 // pred_check_branch
        %1638 = sbr.rel (%p1636) target = $region60
      $region59: #{tpu_custom_call.1} parent=5 // pred_region
        %s1639 = ssub.s32 %s14, 2
        // Predicated region
        $region61: #{tpu_custom_call.1} parent=59 // pred_check
          %p1640 = pneg %p195
        $region62: #{tpu_custom_call.1} parent=59 // pred_check_branch
          %1642 = sbr.rel (%p1640) target = $region64
        $region63: #{tpu_custom_call.1} parent=59 // pred_region
          %p1643 = scmp.lt.s32.totalorder %s20, 1
          %s1644 = scalar_select %p1643, %s20, 1
          %s1645 = smul.addr %s1644, 8
          %s1646 = scalar_lea.vmem %s7, %s1645
        $region64: #{tpu_custom_call.1} parent=59 // pred_fallthru
          _
      $region60: #{tpu_custom_call.1} parent=5 // pred_fallthru
        _
    $region6: #{tpu_custom_call.1} parent=1 // loop_footer
      %s18 = sadd.s32 1, %s14
    $region7: #{tpu_custom_call.1} parent=1 // loop_footer_branch
      %13 = sbr.rel target = $region3
    $region8: #{tpu_custom_call.1} parent=1 // loop_exit
      _
    %1647 = vsyncpa [#allocation3], 1
    %s1648 = scalar_lea.sflag [#allocation3], 1
    %1649 = vsyncpa %s1648, 1

</llo_original>
